<compile_context>
chip_gen: v6e
topology: v6e:2x2x1
jax: 0.10.0
libtpu: 0.0.40
codegen_flags: <defaults>
</compile_context>

<pallas_src>
import functools
import math

import jax
import jax.numpy as jnp
from jax.experimental import pallas as pl
from jax.experimental.pallas import tpu as pltpu


_VMEM_LIMIT_BYTES = 32 * 1024 * 1024   # safe on v5e/v6e (128 MiB) and v7x (64 MiB)


def _simple_kernel(x_ref, wb_ref, o_ref):
    # x_ref: (tm, 1), wb_ref: (2, D), o_ref: (tm, D)
    x = x_ref[...]
    w = wb_ref[0:1, :]
    b = wb_ref[1:2, :]
    o_ref[...] = x * w + b


def _packed_kernel(x_ref, wb_ref, o_ref, *, k, d):
    # x_ref:  (tm, k)    -- k tokens packed per row
    # wb_ref: (2, k*D)   -- weight / bias each tiled k times
    # o_ref:  (tm, k*D)  -- lane-dense: token j occupies lanes [j*D, (j+1)*D)
    x = x_ref[...]
    w = wb_ref[0:1, :]
    b = wb_ref[1:2, :]
    lane = jax.lax.broadcasted_iota(jnp.int32, o_ref.shape, 1)
    # Per-lane-group broadcast of x: lanes in [j*D, (j+1)*D) carry x[:, j].
    # Groups are ordered, so each select only overwrites the higher lanes.
    x_exp = jnp.broadcast_to(x[:, 0:1], o_ref.shape)
    for j in range(1, k):
        x_exp = jnp.where(lane >= j * d, x[:, j:j + 1], x_exp)
    o_ref[...] = x_exp * w + b


def _pick_rows(total_rows, row_bytes, tile_bytes):
    """Largest row-tile (multiple of 8 sublanes) targeting ~tile_bytes."""
    target = max(8, tile_bytes // max(row_bytes, 1))
    if target >= total_rows:
        return total_rows                      # single block == full dim (legal)
    return max(8, (target // 8) * 8)           # multiple of 8; cdiv masks boundary


def real_number_embedding(x, weight, bias, *, tile_bytes=4 * 1024 * 1024,
                          xla_fallback_bytes=0):
    """emb = x[..., None] * weight + bias via a Pallas TPU kernel."""
    orig_shape = x.shape
    D = weight.shape[0]
    out_dtype = jnp.result_type(x.dtype, weight.dtype, bias.dtype)
    itemsize = jnp.dtype(out_dtype).itemsize
    N = int(math.prod(orig_shape))

    # For tiny problems the pallas_call launch/pipeline overhead dominates;
    # let XLA fuse the broadcast FMA instead.  (Set xla_fallback_bytes to a
    # few MiB in production; default 0 so the demo always runs the kernel.)
    if N == 0 or N * D * itemsize < xla_fallback_bytes:
        return (x[..., None].astype(out_dtype) * weight.astype(out_dtype)
                + bias.astype(out_dtype))

    x_flat = x.reshape(N).astype(out_dtype)
    w = weight.astype(out_dtype)
    b = bias.astype(out_dtype)

    # Lane packing factor: k tokens per output row so the row width k*D is a
    # multiple of 128 lanes.
    if D % 128 == 0:
        k = 1
    else:
        k = 128 // math.gcd(D, 128)

    cparams = pltpu.CompilerParams(
        dimension_semantics=("parallel",),
        vmem_limit_bytes=_VMEM_LIMIT_BYTES,
    )

    if k > 1 and N % k == 0 and k <= 16:
        # ------------------ packed, lane-dense path ------------------------
        R = N // k
        KD = k * D
        x2d = x_flat.reshape(R, k)
        wb = jnp.stack([jnp.tile(w, k), jnp.tile(b, k)])        # (2, KD), tiny
        tm = _pick_rows(R, KD * itemsize, tile_bytes)
        out = pl.pallas_call(
            functools.partial(_packed_kernel, k=k, d=D),
            out_shape=jax.ShapeDtypeStruct((R, KD), out_dtype),
            grid_spec=pltpu.PrefetchScalarGridSpec(
                num_scalar_prefetch=0,
                grid=(pl.cdiv(R, tm),),
                in_specs=[
                    pl.BlockSpec((tm, k), lambda i: (i, 0)),
                    pl.BlockSpec((2, KD), lambda i: (0, 0)),
                ],
                out_specs=pl.BlockSpec((tm, KD), lambda i: (i, 0)),
            ),
            compiler_params=cparams,
            cost_estimate=pl.CostEstimate(
                flops=2 * N * D, transcendentals=0,
                bytes_accessed=(N + 2 * KD + N * D) * itemsize),
        )(x2d, wb)
        return out.reshape(*orig_shape, D)

    # ------------------ simple path --------------------------------------
    # Used when D is already a multiple of 128 (lane-dense as-is) or when the
    # packing does not apply (N % k != 0, or k too large for a select chain).
    # For extremely large D the (tm, D) tile should additionally be blocked
    # along D; unnecessary for typical embedding sizes.
    x2d = x_flat.reshape(N, 1)
    wb = jnp.stack([w, b])                                      # (2, D)
    tm = _pick_rows(N, D * itemsize, tile_bytes)
    out = pl.pallas_call(
        _simple_kernel,
        out_shape=jax.ShapeDtypeStruct((N, D), out_dtype),
        grid_spec=pltpu.PrefetchScalarGridSpec(
            num_scalar_prefetch=0,
            grid=(pl.cdiv(N, tm),),
            in_specs=[
                pl.BlockSpec((tm, 1), lambda i: (i, 0)),
                pl.BlockSpec((2, D), lambda i: (0, 0)),
            ],
            out_specs=pl.BlockSpec((tm, D), lambda i: (i, 0)),
        ),
        compiler_params=cparams,
        cost_estimate=pl.CostEstimate(
            flops=2 * N * D, transcendentals=0,
            bytes_accessed=(N + 2 * D + N * D) * itemsize),
    )(x2d, wb)
    return out.reshape(*orig_shape, D)


if __name__ == "__main__":
    key = jax.random.PRNGKey(0)
    k_x, k_w, k_b, k_x2, k_x3 = jax.random.split(key, 5)

    # reset_parameters(): weight ~ N(0, 1), bias ~ N(0, 0.1)
    B, T, D = 2, 8, 32
    weight = jax.random.normal(k_w, (D,), dtype=jnp.float32)
    bias = jax.random.normal(k_b, (D,), dtype=jnp.float32) * 0.1
    x = jax.random.normal(k_x, (B, T), dtype=jnp.float32)

    # Main (packed, lane-dense) path: D=32 -> k=4 tokens per 128-lane row.
    out = jax.block_until_ready(real_number_embedding(x, weight, bias))
    ref = x[..., None] * weight + bias
    assert out.shape == (B, T, D), out.shape
    assert jnp.allclose(out, ref, atol=1e-6, rtol=1e-6), "packed path mismatch"

    # Fallback path: token count not divisible by the packing factor.
    x_odd = jax.random.normal(k_x2, (3, 5), dtype=jnp.float32)
    out_odd = jax.block_until_ready(real_number_embedding(x_odd, weight, bias))
    ref_odd = x_odd[..., None] * weight + bias
    assert out_odd.shape == (3, 5, D)
    assert jnp.allclose(out_odd, ref_odd, atol=1e-6, rtol=1e-6), "fallback mismatch"

    # Lane-dense-by-construction path: D a multiple of 128.
    D2 = 128
    w2 = jax.random.normal(k_w, (D2,), dtype=jnp.float32)
    b2 = jax.random.normal(k_b, (D2,), dtype=jnp.float32) * 0.1
    x2 = jax.random.normal(k_x3, (2, 8), dtype=jnp.float32)
    out2 = jax.block_until_ready(real_number_embedding(x2, w2, b2))
    ref2 = x2[..., None] * w2 + b2
    assert out2.shape == (2, 8, D2)
    assert jnp.allclose(out2, ref2, atol=1e-6, rtol=1e-6), "D%128==0 path mismatch"

    print("KERNEL_OK")
</pallas_src>

<mosaic_0001>
module attributes {stable_mosaic.version = 11 : i64} {
  func.func @_packed_kernel(%arg0: i32, %arg1: memref<4x4xf32, #tpu.memory_space<vmem>>, %arg2: memref<2x128xf32, #tpu.memory_space<vmem>>, %arg3: memref<4x128xf32, #tpu.memory_space<vmem>>) attributes {dimension_semantics = [#tpu.dimension_semantics<parallel>], iteration_bounds = array<i64: 1>, scalar_prefetch = 0 : i64, scratch_operands = 0 : i64, tpu.core_type = #tpu.core_type<tc>, window_params = [{transform_indices = @transform_0, window_bounds = array<i64: 4, 4>}, {pipeline_mode = #tpu.pipeline_mode<synchronous>, transform_indices = @transform_1, window_bounds = array<i64: 2, 128>}, {transform_indices = @transform_2, window_bounds = array<i64: 4, 128>}]} {
    %c0 = arith.constant 0 : index
    %c0_0 = arith.constant 0 : index
    %0 = vector.load %arg1[%c0, %c0_0] : memref<4x4xf32, #tpu.memory_space<vmem>>, vector<4x4xf32>
    %c0_1 = arith.constant 0 : index
    %c0_2 = arith.constant 0 : index
    %1 = vector.load %arg2[%c0_1, %c0_2] : memref<2x128xf32, #tpu.memory_space<vmem>>, vector<1x128xf32>
    %c1 = arith.constant 1 : index
    %c0_3 = arith.constant 0 : index
    %2 = vector.load %arg2[%c1, %c0_3] : memref<2x128xf32, #tpu.memory_space<vmem>>, vector<1x128xf32>
    %3 = tpu.iota {dimensions = array<i32: 1>} : vector<4x128xi32>
    %4 = vector.extract_strided_slice %0 {offsets = [0, 0], sizes = [4, 1], strides = [1, 1]} : vector<4x4xf32> to vector<4x1xf32>
    %5 = vector.shape_cast %4 : vector<4x1xf32> to vector<4x1xf32>
    %6 = vector.broadcast %5 : vector<4x1xf32> to vector<4x128xf32>
    %c32_i32 = arith.constant 32 : i32
    %7 = vector.broadcast %c32_i32 : i32 to vector<4x128xi32>
    %8 = arith.cmpi sge, %3, %7 : vector<4x128xi32>
    %9 = vector.extract_strided_slice %0 {offsets = [0, 1], sizes = [4, 1], strides = [1, 1]} : vector<4x4xf32> to vector<4x1xf32>
    %10 = vector.shape_cast %9 : vector<4x1xf32> to vector<4x1xf32>
    %11 = vector.broadcast %10 : vector<4x1xf32> to vector<4x128xf32>
    %12 = arith.select %8, %11, %6 : vector<4x128xi1>, vector<4x128xf32>
    %c64_i32 = arith.constant 64 : i32
    %13 = vector.broadcast %c64_i32 : i32 to vector<4x128xi32>
    %14 = arith.cmpi sge, %3, %13 : vector<4x128xi32>
    %15 = vector.extract_strided_slice %0 {offsets = [0, 2], sizes = [4, 1], strides = [1, 1]} : vector<4x4xf32> to vector<4x1xf32>
    %16 = vector.shape_cast %15 : vector<4x1xf32> to vector<4x1xf32>
    %17 = vector.broadcast %16 : vector<4x1xf32> to vector<4x128xf32>
    %18 = arith.select %14, %17, %12 : vector<4x128xi1>, vector<4x128xf32>
    %c96_i32 = arith.constant 96 : i32
    %19 = vector.broadcast %c96_i32 : i32 to vector<4x128xi32>
    %20 = arith.cmpi sge, %3, %19 : vector<4x128xi32>
    %21 = vector.extract_strided_slice %0 {offsets = [0, 3], sizes = [4, 1], strides = [1, 1]} : vector<4x4xf32> to vector<4x1xf32>
    %22 = vector.shape_cast %21 : vector<4x1xf32> to vector<4x1xf32>
    %23 = vector.broadcast %22 : vector<4x1xf32> to vector<4x128xf32>
    %24 = arith.select %20, %23, %18 : vector<4x128xi1>, vector<4x128xf32>
    %25 = vector.broadcast %1 : vector<1x128xf32> to vector<4x128xf32>
    %26 = arith.mulf %24, %25 : vector<4x128xf32>
    %27 = vector.broadcast %2 : vector<1x128xf32> to vector<4x128xf32>
    %28 = arith.addf %26, %27 : vector<4x128xf32>
    %c0_4 = arith.constant 0 : index
    %c0_5 = arith.constant 0 : index
    %29 = vector.load %arg3[%c0_4, %c0_5] : memref<4x128xf32, #tpu.memory_space<vmem>>, vector<4x128xf32>
    tpu.vector_store %arg3[%c0_4, %c0_5], %28 {strides = array<i32>} : memref<4x128xf32, #tpu.memory_space<vmem>>, vector<4x128xf32>,
    return
  }
  func.func @transform_0(%arg0: i32) -> (i32, i32) {
    %c0_i32 = arith.constant 0 : i32
    %c0_i32_0 = arith.constant 0 : i32
    return %arg0, %c0_i32 : i32, i32
  }
  func.func @transform_1(%arg0: i32) -> (i32, i32) {
    %c0_i32 = arith.constant 0 : i32
    %c0_i32_0 = arith.constant 0 : i32
    %c0_i32_1 = arith.constant 0 : i32
    return %c0_i32, %c0_i32_0 : i32, i32
  }
  func.func @transform_2(%arg0: i32) -> (i32, i32) {
    %c0_i32 = arith.constant 0 : i32
    %c0_i32_0 = arith.constant 0 : i32
    return %arg0, %c0_i32 : i32, i32
  }
}

</mosaic_0001>

<llo_original>
// kernel: tpu_custom_call.1
$region0: #{tpu_custom_call.1}
  #allocation0 [shape = 'u32[]', space=smem, size = 0x4, offset = 0x4, fixed_abs, tag = 'smem constant byte address 0x4 - core index']
  #allocation1 [shape = 'u32[144,128]{1,0:T(1,128)}', space=vmem, size = 0x12000, scoped, tag = 'internal scratch']
  %s0 = inlined_call_operand.hbm [shape: f32[4,4], index: 0, kind: input, shape index: {}]
  %s1 = inlined_call_operand.hbm [shape: f32[2,128], index: 1, kind: input, shape index: {}]
  %s2 = inlined_call_operand.hbm [shape: f32[4,128], index: 2, kind: output, shape index: {}]
  %s3 = sld [smem:[#allocation0]]
  $region26: #{tpu_custom_call.1} parent=0
    _
  %s5 = ssub.s32 1, %s3
  %s6 = scalar_select 0, %s5, %s3
  $region1: #{tpu_custom_call.1} parent=0
    #allocation2 [shape = 'u8[2048]{0}', space=vmem, size = 0x800, scoped, tag = 'input window, operand 0, single buffered']
    #allocation3 [shape = 's32[1]{0}', space=sflag, size = 0x4, scoped, tag = 'scoped memory for tpu_custom_call.1']
    #allocation4 [shape = 's32[1]{0}', space=sflag, size = 0x4, scoped, tag = 'scoped memory for tpu_custom_call.1']
    #allocation5 [shape = 'u8[1024]{0}', space=vmem, size = 0x400, scoped, tag = 'input window, operand 1, single buffered']
    #allocation6 [shape = 's32[1]{0}', space=sflag, size = 0x4, scoped, tag = 'scoped memory for tpu_custom_call.1']
    #allocation7 [shape = 'u8[2048]{0}', space=vmem, size = 0x800, scoped, tag = 'output window, operand 0, single buffered']
    %7 = vsyncpa [#allocation3], 0
    %8 = vsyncpa [#allocation6], 0
    %9 = vsyncpa [#allocation4], 0
    // Predicated region
    $region2: #{tpu_custom_call.1} parent=1 // pred_check
      _
    $region3: #{tpu_custom_call.1} parent=1 // pred_check_branch
      %11 = sbr.rel (0) target = $region5
    $region4: #{tpu_custom_call.1} parent=1 // pred_region
      %s13 = ssub.s32 64, 64
      %14 = vsyncadd [#allocation3], %s13
      %s16 = sshll.u32 [#allocation2], 4
      %s17 = int_to_ptr.vmem [resolvable:$true] %s16
      %19 = dma.hbm_to_vmem [thread:$0]  %s0, 64, %s17, [#allocation3]
    $region5: #{tpu_custom_call.1} parent=1 // pred_fallthru
      _
    // Predicated region
    $region6: #{tpu_custom_call.1} parent=1 // pred_check
      _
    $region7: #{tpu_custom_call.1} parent=1 // pred_check_branch
      %21 = sbr.rel (0) target = $region9
    $region8: #{tpu_custom_call.1} parent=1 // pred_region
      %s23 = ssub.s32 32, 32
      %24 = vsyncadd [#allocation6], %s23
      %s26 = sshll.u32 [#allocation5], 4
      %s27 = int_to_ptr.vmem [resolvable:$true] %s26
      %29 = dma.hbm_to_vmem [thread:$0]  %s1, 32, %s27, [#allocation6]
    $region9: #{tpu_custom_call.1} parent=1 // pred_fallthru
      _
    // Predicated region
    $region10: #{tpu_custom_call.1} parent=1 // pred_check
      _
    $region11: #{tpu_custom_call.1} parent=1 // pred_check_branch
      %31 = sbr.rel (0) target = $region13
    $region12: #{tpu_custom_call.1} parent=1 // pred_region
      %32 = dma.done [#allocation3], 64
    $region13: #{tpu_custom_call.1} parent=1 // pred_fallthru
      _
    // Predicated region
    $region14: #{tpu_custom_call.1} parent=1 // pred_check
      _
    $region15: #{tpu_custom_call.1} parent=1 // pred_check_branch
      %34 = sbr.rel (0) target = $region17
    $region16: #{tpu_custom_call.1} parent=1 // pred_region
      %35 = dma.done [#allocation6], 32
    $region17: #{tpu_custom_call.1} parent=1 // pred_fallthru
      _
    %v36 = vld [vmem:[#allocation2] sm:$0xf]
    %v37 = vld [vmem:[#allocation5] sm:$0x1]
    %v38 = vld [vmem:[#allocation5 + $0x1] sm:$0x1]
    %v39 = vlaneseq
    %v40 = vand.u32 %v39, 127
    %42 = vset.pattern.permute.xlu0 0
    %43 = vperm.xlu0 %42, %v36
    %v44 = vpop.permute.xlu0 %43
    %vm46 = vcmp.ge.s32.totalorder %v40, 32
    %47 = vset.pattern.permute.xlu0 1
    %48 = vperm.xlu0 %47, %v36
    %v49 = vpop.permute.xlu0 %48
    %v51 = vsel %vm46, %v49, %v44
    %vm52 = vcmp.ge.s32.totalorder %v40, 64
    %53 = vset.pattern.permute.xlu0 2
    %54 = vperm.xlu0 %53, %v36
    %v55 = vpop.permute.xlu0 %54
    %v57 = vsel %vm52, %v55, %v51
    %vm58 = vcmp.ge.s32.totalorder %v40, 96
    %59 = vset.pattern.permute.xlu0 3
    %60 = vperm.xlu0 %59, %v36
    %v61 = vpop.permute.xlu0 %60
    %v63 = vsel %vm58, %v61, %v57
    %v64 = vlaneseq
    %v65 = vshrl.u32 %v64, 7
    %v66 = vsub.s32 0, %v65
    %v67 = vrot.slane %v37, %v66
    %v68 = vmul.f32 %v63, %v67
    %v69 = vlaneseq
    %v70 = vshrl.u32 %v69, 7
    %v71 = vsub.s32 0, %v70
    %v72 = vrot.slane %v38, %v71
    %v73 = vadd.f32 %v68, %v72
    %74 = vst [vmem:[#allocation7] sm:$0xf] %v73
    // Predicated region
    $region18: #{tpu_custom_call.1} parent=1 // pred_check
      _
    $region19: #{tpu_custom_call.1} parent=1 // pred_check_branch
      %76 = sbr.rel (0) target = $region21
    $region20: #{tpu_custom_call.1} parent=1 // pred_region
      %s78 = ssub.s32 64, 64
      %79 = vsyncadd [#allocation4], %s78
      %s81 = sshll.u32 [#allocation7], 4
      %s82 = int_to_ptr.vmem [resolvable:$true] %s81
      %84 = dma.vmem_to_hbm [thread:$0]  %s82, 64, %s2, [#allocation4]
    $region21: #{tpu_custom_call.1} parent=1 // pred_fallthru
      _
    // Predicated region
    $region22: #{tpu_custom_call.1} parent=1 // pred_check
      _
    $region23: #{tpu_custom_call.1} parent=1 // pred_check_branch
      %86 = sbr.rel (0) target = $region25
    $region24: #{tpu_custom_call.1} parent=1 // pred_region
      %87 = dma.done [#allocation4], 64
    $region25: #{tpu_custom_call.1} parent=1 // pred_fallthru
      _
    %88 = vsyncpa [#allocation3], 1
    %89 = vsyncpa [#allocation6], 1
    %90 = vsyncpa [#allocation4], 1

</llo_original>
